<compile_context>
chip_gen: v7x
topology: tpu7x:2x2x1
jax: 0.10.0
libtpu: 0.0.40
codegen_flags: <defaults>
</compile_context>

<pallas_src>
import functools

import jax
import jax.numpy as jnp
import numpy as np
from jax.experimental import pallas as pl
from jax.experimental.pallas import tpu as pltpu

WIN_SIZE = 11
WIN_SIGMA = 1.5
K1 = 0.01
K2 = 0.03


def _gaussian_window_1d(size: int, sigma: float) -> np.ndarray:
    # Matches pytorch_msssim._fspecial_gauss_1d
    coords = np.arange(size, dtype=np.float64) - size // 2
    g = np.exp(-(coords ** 2) / (2.0 * sigma ** 2))
    g /= g.sum()
    return g


def _band_matrix(n_out: int, n_in: int, win: np.ndarray) -> np.ndarray:
    """Banded matrix B with B[v, v:v+len(win)] = win (valid correlation)."""
    m = np.zeros((n_out, n_in), dtype=np.float64)
    for v in range(n_out):
        m[v, v:v + len(win)] = win
    return m


def _vmem_capacity_bytes() -> int:
    try:
        return int(pltpu.get_tpu_info().vmem_capacity_bytes)
    except Exception:
        return 64 * 2 ** 20  # conservative (v7x-sized) fallback


def _vmem_estimate_bytes(p, h, w, hv, wv, in_itemsize):
    """Per-grid-step VMEM footprint (double-buffered inputs/constants + live temps)."""
    f32, bf16 = 4, 2
    pw, pwv = p * w, p * wv
    inputs = 2 * 2 * h * pw * in_itemsize          # x, y (2x pipeline buffers)
    consts = 2 * (hv * h + pw * pwv) * bf16        # gh, gwt (2x pipeline buffers)
    centered = 2 * h * pw * f32                    # centered x, y (f32, live)
    mxu_ops = 5 * h * pw * bf16                    # bf16 blur operands
    w_pass = 5 * h * pwv * (f32 + bf16)            # W-pass result + bf16 copy
    maps = 16 * hv * pwv * f32                     # blurred planes + SSIM-map temps
    return inputs + consts + centered + mxu_ops + w_pass + maps


def _pick_pack(n, h, w, hv, wv, in_itemsize, budget):
    """Lane-packing factor p (images packed side-by-side along W).

    Smallest divisor of n that makes the packed lane width p*W >= 128 while
    fitting the VMEM budget (smallest -> max grid steps for pipelining /
    megacore).  If no divisor reaches 128 lanes, pack as much as fits.
    """
    divs = [d for d in range(1, n + 1) if n % d == 0]
    fits = [d for d in divs
            if _vmem_estimate_bytes(d, h, w, hv, wv, in_itemsize) <= budget]
    if not fits:
        return 1
    lane_ok = [d for d in fits if d * w >= 128]
    if lane_ok:
        return min(lane_ok)
    return max(fits)


def _ssim_kernel(x_ref, y_ref, gh_ref, gwt_ref, out_ref, *, c, c1, c2, inv_count):
    """Mean SSIM for one block of p images packed side-by-side along W.

    x_ref / y_ref : (H, p*W) VMEM tiles (original input dtype)
    gh_ref        : (hv, H) banded Gaussian matrix, bf16
    gwt_ref       : (p*W, p*wv) block-diagonal banded Gaussian matrix, bf16
    out_ref       : (1, 1) mean SSIM of this block
    """
    f32 = jnp.float32
    bf16 = jnp.bfloat16
    cf = f32(c)

    # Cast in-kernel (inputs DMA'd in original dtype); center by data_range/2
    # so the E[x^2] - mu^2 cancellation stays well conditioned in bf16.
    x = x_ref[...].astype(f32) - cf          # (H, pW)
    y = y_ref[...].astype(f32) - cf

    gwt = gwt_ref[...]                       # (pW, pwv) bf16, block-diagonal
    gh = gh_ref[...]                         # (hv, H)  bf16

    def blur(op_f32):
        # Separable "valid" Gaussian blur as two un-batched bf16 MXU matmuls
        # (f32 accumulation), fed straight from vregs — no concat slab, no
        # broadcast copies of the Gaussian matrices.
        t = jnp.dot(op_f32.astype(bf16), gwt, preferred_element_type=f32)   # (H, pwv)
        return jnp.dot(gh, t.astype(bf16), preferred_element_type=f32)      # (hv, pwv)

    b0 = blur(x)          # E[x - c]
    b1 = blur(y)          # E[y - c]
    e_xx = blur(x * x)    # E[(x - c)^2]
    e_yy = blur(y * y)    # E[(y - c)^2]
    e_xy = blur(x * y)    # E[(x - c)(y - c)]

    mu1 = b0 + cf
    mu2 = b1 + cf
    sigma1_sq = e_xx - b0 * b0
    sigma2_sq = e_yy - b1 * b1
    sigma12 = e_xy - b0 * b1

    num = (2.0 * mu1 * mu2 + f32(c1)) * (2.0 * sigma12 + f32(c2))
    den = (mu1 * mu1 + mu2 * mu2 + f32(c1)) * (sigma1_sq + sigma2_sq + f32(c2))

    # EUP approximate reciprocal + one Newton step (den > 0 always).
    r = pl.reciprocal(den, approx=True)
    r = r * (2.0 - den * r)
    ssim_map = num * r                                   # (hv, pwv) lane-dense

    # Block mean; the divide is folded into a precomputed constant multiply.
    s = jnp.sum(ssim_map, axis=1, keepdims=True)         # (hv, 1) lane reduce
    s = jnp.sum(s, axis=0, keepdims=True)                # (1, 1)  sublane reduce
    out_ref[...] = s * f32(inv_count)


def ssim_loss(net_out: jax.Array, label: jax.Array, data_range: float = 255.0) -> jax.Array:
    """Equivalent of SSIM_Loss.forward(net_out, label): mean SSIM (scalar).

    Note: the reference module returns ssim(...) directly (not 1 - ssim).
    """
    assert net_out.shape == label.shape and net_out.ndim == 4
    B, C, H, W = net_out.shape
    assert H >= WIN_SIZE and W >= WIN_SIZE, "spatial dims must be >= window size (11)"

    N = B * C
    hv = H - WIN_SIZE + 1
    wv = W - WIN_SIZE + 1

    win = _gaussian_window_1d(WIN_SIZE, WIN_SIGMA)
    gh = np.ascontiguousarray(_band_matrix(hv, H, win), dtype=np.float32)   # (hv, H)
    gwt1 = _band_matrix(wv, W, win).T.astype(np.float32)                    # (W, wv)

    in_itemsize = np.dtype(net_out.dtype).itemsize
    cap = _vmem_capacity_bytes()
    # Generation-aware pack budget: small on 64 MiB-VMEM parts, larger on 128 MiB.
    budget = 20 * 2 ** 20 if cap <= 64 * 2 ** 20 else 48 * 2 ** 20
    p = _pick_pack(N, H, W, hv, wv, in_itemsize, budget)
    nb = N // p
    pW, pwv = p * W, p * wv

    # Block-diagonal W-pass Gaussian: cross-image terms are exactly zero.
    gwt = np.zeros((pW, pwv), dtype=np.float32)
    for j in range(p):
        gwt[j * W:(j + 1) * W, j * wv:(j + 1) * wv] = gwt1

    c1 = float((K1 * data_range) ** 2)
    c2 = float((K2 * data_range) ** 2)
    c = 0.5 * float(data_range)

    # Lane-pack p images side-by-side along W (wrapper layout plumbing only;
    # original dtype is preserved and cast inside the kernel).
    def pack(a):
        a = a.reshape(N, H, W).reshape(nb, p, H, W)
        return jnp.transpose(a, (0, 2, 1, 3)).reshape(nb, H, pW)

    x = pack(net_out)
    y = pack(label)

    est = _vmem_estimate_bytes(p, H, W, hv, wv, in_itemsize)
    vmem_limit = int(min(max(32 * 2 ** 20, 2 * est), int(0.75 * cap)))

    kernel = functools.partial(
        _ssim_kernel, c=c, c1=c1, c2=c2,
        inv_count=1.0 / float(p * hv * wv))

    per_block = pl.pallas_call(
        kernel,
        out_shape=jax.ShapeDtypeStruct((nb, 1, 1), jnp.float32),
        grid_spec=pltpu.PrefetchScalarGridSpec(
            num_scalar_prefetch=0,
            grid=(nb,),
            in_specs=[
                pl.BlockSpec((None, H, pW), lambda i: (i, 0, 0)),
                pl.BlockSpec((None, H, pW), lambda i: (i, 0, 0)),
                pl.BlockSpec((hv, H), lambda i: (0, 0)),
                pl.BlockSpec((pW, pwv), lambda i: (0, 0)),
            ],
            out_specs=pl.BlockSpec((None, 1, 1), lambda i: (i, 0, 0)),
        ),
        compiler_params=pltpu.CompilerParams(
            dimension_semantics=("parallel",),
            vmem_limit_bytes=vmem_limit,
        ),
    )(x, y,
      jnp.asarray(gh, dtype=jnp.bfloat16),
      jnp.asarray(gwt, dtype=jnp.bfloat16))

    # size_average=True: mean over batch & channel.  Blocks are equal-sized, so
    # the mean of per-block means equals the global mean.
    return jnp.mean(per_block)


def _ssim_ref_numpy(x: np.ndarray, y: np.ndarray, data_range: float) -> float:
    """float64 numpy reference (same math as pytorch_msssim.ssim)."""
    n, h, w = x.shape
    hv = h - WIN_SIZE + 1
    wv = w - WIN_SIZE + 1
    win = _gaussian_window_1d(WIN_SIZE, WIN_SIGMA)
    gh = _band_matrix(hv, h, win)
    gwt = _band_matrix(wv, w, win).T

    def blur(img):
        t = np.einsum("nhw,wj->nhj", img, gwt)
        return np.einsum("vh,nhj->nvj", gh, t)

    mu1, mu2 = blur(x), blur(y)
    s1 = blur(x * x) - mu1 ** 2
    s2 = blur(y * y) - mu2 ** 2
    s12 = blur(x * y) - mu1 * mu2
    c1 = (K1 * data_range) ** 2
    c2 = (K2 * data_range) ** 2
    ssim_map = ((2 * mu1 * mu2 + c1) * (2 * s12 + c2)) / (
        (mu1 ** 2 + mu2 ** 2 + c1) * (s1 + s2 + c2))
    return float(ssim_map.mean())


if __name__ == "__main__":
    key = jax.random.PRNGKey(0)
    k1, k2 = jax.random.split(key)

    B, C, H, W = 2, 4, 16, 16
    # images in [0, 255] consistent with data_range=255
    net_out = jax.random.uniform(k1, (B, C, H, W), jnp.float32) * 255.0
    label = jax.random.uniform(k2, (B, C, H, W), jnp.float32) * 255.0

    loss = jax.block_until_ready(ssim_loss(net_out, label, data_range=255.0))

    # sanity vs float64 numpy reference of pytorch_msssim.ssim
    ref = _ssim_ref_numpy(
        np.asarray(net_out, np.float64).reshape(B * C, H, W),
        np.asarray(label, np.float64).reshape(B * C, H, W),
        255.0)
    assert jnp.isfinite(loss), "non-finite SSIM"
    assert abs(float(loss) - ref) < 2e-2, (float(loss), ref)

    # SSIM of an image with itself must be ~1 (num == den bit-for-bit).
    self_ssim = jax.block_until_ready(ssim_loss(net_out, net_out, data_range=255.0))
    assert abs(float(self_ssim) - 1.0) < 1e-4, float(self_ssim)

    print("KERNEL_OK")
</pallas_src>

<mosaic_0001>
module attributes {stable_mosaic.version = 11 : i64} {
  func.func @_ssim_kernel(%arg0: i32, %arg1: memref<1x16x128xf32, #tpu.memory_space<vmem>>, %arg2: memref<1x16x128xf32, #tpu.memory_space<vmem>>, %arg3: memref<6x16xbf16, #tpu.memory_space<vmem>>, %arg4: memref<128x48xbf16, #tpu.memory_space<vmem>>, %arg5: memref<1x1x1xf32, #tpu.memory_space<vmem>>) attributes {dimension_semantics = [#tpu.dimension_semantics<parallel>], iteration_bounds = array<i64: 1>, scalar_prefetch = 0 : i64, scratch_operands = 0 : i64, tpu.core_type = #tpu.core_type<tc>, window_params = [{transform_indices = @transform_0, window_bounds = array<i64: 1, 16, 128>}, {transform_indices = @transform_1, window_bounds = array<i64: 1, 16, 128>}, {pipeline_mode = #tpu.pipeline_mode<synchronous>, transform_indices = @transform_2, window_bounds = array<i64: 6, 16>}, {pipeline_mode = #tpu.pipeline_mode<synchronous>, transform_indices = @transform_3, window_bounds = array<i64: 128, 48>}, {transform_indices = @transform_4, window_bounds = array<i64: 1, 1, 1>}]} {
    %c0 = arith.constant 0 : index
    %c0_0 = arith.constant 0 : index
    %c0_1 = arith.constant 0 : index
    %0 = vector.load %arg1[%c0, %c0_0, %c0_1] : memref<1x16x128xf32, #tpu.memory_space<vmem>>, vector<1x16x128xf32>
    %1 = vector.shape_cast %0 : vector<1x16x128xf32> to vector<16x128xf32>
    %cst = arith.constant 1.275000e+02 : f32
    %2 = vector.broadcast %cst : f32 to vector<16x128xf32>
    %3 = arith.subf %1, %2 : vector<16x128xf32>
    %c0_2 = arith.constant 0 : index
    %c0_3 = arith.constant 0 : index
    %c0_4 = arith.constant 0 : index
    %4 = vector.load %arg2[%c0_2, %c0_3, %c0_4] : memref<1x16x128xf32, #tpu.memory_space<vmem>>, vector<1x16x128xf32>
    %5 = vector.shape_cast %4 : vector<1x16x128xf32> to vector<16x128xf32>
    %cst_5 = arith.constant 1.275000e+02 : f32
    %6 = vector.broadcast %cst_5 : f32 to vector<16x128xf32>
    %7 = arith.subf %5, %6 : vector<16x128xf32>
    %c0_6 = arith.constant 0 : index
    %c0_7 = arith.constant 0 : index
    %8 = vector.load %arg4[%c0_6, %c0_7] : memref<128x48xbf16, #tpu.memory_space<vmem>>, vector<128x48xbf16>
    %c0_8 = arith.constant 0 : index
    %c0_9 = arith.constant 0 : index
    %9 = vector.load %arg3[%c0_8, %c0_9] : memref<6x16xbf16, #tpu.memory_space<vmem>>, vector<6x16xbf16>
    %10 = arith.truncf %3 : vector<16x128xf32> to vector<16x128xbf16>
    %cst_10 = arith.constant dense<0.000000e+00> : vector<16x48xf32>
    %11 = tpu.matmul %10, %8, %cst_10 {dimension_numbers = #tpu.dot_dimension_numbers<[1], [0], [0], [1], [0, 0, 1, 1], [], []>} : vector<16x128xbf16>, vector<128x48xbf16>, vector<16x48xf32> -> vector<16x48xf32>
    %12 = arith.truncf %11 : vector<16x48xf32> to vector<16x48xbf16>
    %cst_11 = arith.constant dense<0.000000e+00> : vector<6x48xf32>
    %13 = tpu.matmul %9, %12, %cst_11 {dimension_numbers = #tpu.dot_dimension_numbers<[1], [0], [0], [1], [0, 0, 1, 1], [], []>} : vector<6x16xbf16>, vector<16x48xbf16>, vector<6x48xf32> -> vector<6x48xf32>
    %14 = arith.truncf %7 : vector<16x128xf32> to vector<16x128xbf16>
    %cst_12 = arith.constant dense<0.000000e+00> : vector<16x48xf32>
    %15 = tpu.matmul %14, %8, %cst_12 {dimension_numbers = #tpu.dot_dimension_numbers<[1], [0], [0], [1], [0, 0, 1, 1], [], []>} : vector<16x128xbf16>, vector<128x48xbf16>, vector<16x48xf32> -> vector<16x48xf32>
    %16 = arith.truncf %15 : vector<16x48xf32> to vector<16x48xbf16>
    %cst_13 = arith.constant dense<0.000000e+00> : vector<6x48xf32>
    %17 = tpu.matmul %9, %16, %cst_13 {dimension_numbers = #tpu.dot_dimension_numbers<[1], [0], [0], [1], [0, 0, 1, 1], [], []>} : vector<6x16xbf16>, vector<16x48xbf16>, vector<6x48xf32> -> vector<6x48xf32>
    %18 = arith.mulf %3, %3 : vector<16x128xf32>
    %19 = arith.truncf %18 : vector<16x128xf32> to vector<16x128xbf16>
    %cst_14 = arith.constant dense<0.000000e+00> : vector<16x48xf32>
    %20 = tpu.matmul %19, %8, %cst_14 {dimension_numbers = #tpu.dot_dimension_numbers<[1], [0], [0], [1], [0, 0, 1, 1], [], []>} : vector<16x128xbf16>, vector<128x48xbf16>, vector<16x48xf32> -> vector<16x48xf32>
    %21 = arith.truncf %20 : vector<16x48xf32> to vector<16x48xbf16>
    %cst_15 = arith.constant dense<0.000000e+00> : vector<6x48xf32>
    %22 = tpu.matmul %9, %21, %cst_15 {dimension_numbers = #tpu.dot_dimension_numbers<[1], [0], [0], [1], [0, 0, 1, 1], [], []>} : vector<6x16xbf16>, vector<16x48xbf16>, vector<6x48xf32> -> vector<6x48xf32>
    %23 = arith.mulf %7, %7 : vector<16x128xf32>
    %24 = arith.truncf %23 : vector<16x128xf32> to vector<16x128xbf16>
    %cst_16 = arith.constant dense<0.000000e+00> : vector<16x48xf32>
    %25 = tpu.matmul %24, %8, %cst_16 {dimension_numbers = #tpu.dot_dimension_numbers<[1], [0], [0], [1], [0, 0, 1, 1], [], []>} : vector<16x128xbf16>, vector<128x48xbf16>, vector<16x48xf32> -> vector<16x48xf32>
    %26 = arith.truncf %25 : vector<16x48xf32> to vector<16x48xbf16>
    %cst_17 = arith.constant dense<0.000000e+00> : vector<6x48xf32>
    %27 = tpu.matmul %9, %26, %cst_17 {dimension_numbers = #tpu.dot_dimension_numbers<[1], [0], [0], [1], [0, 0, 1, 1], [], []>} : vector<6x16xbf16>, vector<16x48xbf16>, vector<6x48xf32> -> vector<6x48xf32>
    %28 = arith.mulf %3, %7 : vector<16x128xf32>
    %29 = arith.truncf %28 : vector<16x128xf32> to vector<16x128xbf16>
    %cst_18 = arith.constant dense<0.000000e+00> : vector<16x48xf32>
    %30 = tpu.matmul %29, %8, %cst_18 {dimension_numbers = #tpu.dot_dimension_numbers<[1], [0], [0], [1], [0, 0, 1, 1], [], []>} : vector<16x128xbf16>, vector<128x48xbf16>, vector<16x48xf32> -> vector<16x48xf32>
    %31 = arith.truncf %30 : vector<16x48xf32> to vector<16x48xbf16>
    %cst_19 = arith.constant dense<0.000000e+00> : vector<6x48xf32>
    %32 = tpu.matmul %9, %31, %cst_19 {dimension_numbers = #tpu.dot_dimension_numbers<[1], [0], [0], [1], [0, 0, 1, 1], [], []>} : vector<6x16xbf16>, vector<16x48xbf16>, vector<6x48xf32> -> vector<6x48xf32>
    %cst_20 = arith.constant 1.275000e+02 : f32
    %33 = vector.broadcast %cst_20 : f32 to vector<6x48xf32>
    %34 = arith.addf %13, %33 : vector<6x48xf32>
    %cst_21 = arith.constant 1.275000e+02 : f32
    %35 = vector.broadcast %cst_21 : f32 to vector<6x48xf32>
    %36 = arith.addf %17, %35 : vector<6x48xf32>
    %37 = arith.mulf %13, %13 : vector<6x48xf32>
    %38 = arith.subf %22, %37 : vector<6x48xf32>
    %39 = arith.mulf %17, %17 : vector<6x48xf32>
    %40 = arith.subf %27, %39 : vector<6x48xf32>
    %41 = arith.mulf %13, %17 : vector<6x48xf32>
    %42 = arith.subf %32, %41 : vector<6x48xf32>
    %cst_22 = arith.constant 2.000000e+00 : f32
    %43 = vector.broadcast %cst_22 : f32 to vector<6x48xf32>
    %44 = arith.mulf %43, %34 : vector<6x48xf32>
    %45 = arith.mulf %44, %36 : vector<6x48xf32>
    %cst_23 = arith.constant 6.502500e+00 : f32
    %46 = vector.broadcast %cst_23 : f32 to vector<6x48xf32>
    %47 = arith.addf %45, %46 : vector<6x48xf32>
    %cst_24 = arith.constant 2.000000e+00 : f32
    %48 = vector.broadcast %cst_24 : f32 to vector<6x48xf32>
    %49 = arith.mulf %48, %42 : vector<6x48xf32>
    %cst_25 = arith.constant 5.852250e+01 : f32
    %50 = vector.broadcast %cst_25 : f32 to vector<6x48xf32>
    %51 = arith.addf %49, %50 : vector<6x48xf32>
    %52 = arith.mulf %47, %51 : vector<6x48xf32>
    %53 = arith.mulf %34, %34 : vector<6x48xf32>
    %54 = arith.mulf %36, %36 : vector<6x48xf32>
    %55 = arith.addf %53, %54 : vector<6x48xf32>
    %cst_26 = arith.constant 6.502500e+00 : f32
    %56 = vector.broadcast %cst_26 : f32 to vector<6x48xf32>
    %57 = arith.addf %55, %56 : vector<6x48xf32>
    %58 = arith.addf %38, %40 : vector<6x48xf32>
    %cst_27 = arith.constant 5.852250e+01 : f32
    %59 = vector.broadcast %cst_27 : f32 to vector<6x48xf32>
    %60 = arith.addf %58, %59 : vector<6x48xf32>
    %61 = arith.mulf %57, %60 : vector<6x48xf32>
    %62 = tpu.reciprocal %61 {approx = true} : vector<6x48xf32> -> vector<6x48xf32>
    %63 = arith.mulf %61, %62 : vector<6x48xf32>
    %cst_28 = arith.constant 2.000000e+00 : f32
    %64 = vector.broadcast %cst_28 : f32 to vector<6x48xf32>
    %65 = arith.subf %64, %63 : vector<6x48xf32>
    %66 = arith.mulf %62, %65 : vector<6x48xf32>
    %67 = arith.mulf %52, %66 : vector<6x48xf32>
    %cst_29 = arith.constant dense<0.000000e+00> : vector<6xf32>
    %68 = vector.multi_reduction <add>, %67, %cst_29 [1] : vector<6x48xf32> to vector<6xf32>
    %69 = vector.shape_cast %68 : vector<6xf32> to vector<6x1xf32>
    %cst_30 = arith.constant dense<0.000000e+00> : vector<1xf32>
    %70 = vector.multi_reduction <add>, %69, %cst_30 [0] : vector<6x1xf32> to vector<1xf32>
    %71 = vector.shape_cast %70 : vector<1xf32> to vector<1x1xf32>
    %cst_31 = arith.constant 0.00347222225 : f32
    %72 = vector.broadcast %cst_31 : f32 to vector<1x1xf32>
    %73 = arith.mulf %71, %72 : vector<1x1xf32>
    %c0_32 = arith.constant 0 : index
    %c0_33 = arith.constant 0 : index
    %c0_34 = arith.constant 0 : index
    %74 = vector.load %arg5[%c0_32, %c0_33, %c0_34] : memref<1x1x1xf32, #tpu.memory_space<vmem>>, vector<1x1x1xf32>
    %75 = vector.shape_cast %74 : vector<1x1x1xf32> to vector<1x1xf32>
    %76 = vector.shape_cast %73 : vector<1x1xf32> to vector<1x1x1xf32>
    tpu.vector_store %arg5[%c0_32, %c0_33, %c0_34], %76 {strides = array<i32>} : memref<1x1x1xf32, #tpu.memory_space<vmem>>, vector<1x1x1xf32>,
    return
  }
  func.func @transform_0(%arg0: i32) -> (i32, i32, i32) {
    %c0_i32 = arith.constant 0 : i32
    %c0_i32_0 = arith.constant 0 : i32
    %c0_i32_1 = arith.constant 0 : i32
    return %arg0, %c0_i32, %c0_i32_0 : i32, i32, i32
  }
  func.func @transform_1(%arg0: i32) -> (i32, i32, i32) {
    %c0_i32 = arith.constant 0 : i32
    %c0_i32_0 = arith.constant 0 : i32
    %c0_i32_1 = arith.constant 0 : i32
    return %arg0, %c0_i32, %c0_i32_0 : i32, i32, i32
  }
  func.func @transform_2(%arg0: i32) -> (i32, i32) {
    %c0_i32 = arith.constant 0 : i32
    %c0_i32_0 = arith.constant 0 : i32
    %c0_i32_1 = arith.constant 0 : i32
    return %c0_i32, %c0_i32_0 : i32, i32
  }
  func.func @transform_3(%arg0: i32) -> (i32, i32) {
    %c0_i32 = arith.constant 0 : i32
    %c0_i32_0 = arith.constant 0 : i32
    %c0_i32_1 = arith.constant 0 : i32
    return %c0_i32, %c0_i32_0 : i32, i32
  }
  func.func @transform_4(%arg0: i32) -> (i32, i32, i32) {
    %c0_i32 = arith.constant 0 : i32
    %c0_i32_0 = arith.constant 0 : i32
    %c0_i32_1 = arith.constant 0 : i32
    return %arg0, %c0_i32, %c0_i32_0 : i32, i32, i32
  }
}

</mosaic_0001>

<llo_original>
// kernel: tpu_custom_call.1
$region0: #{tpu_custom_call.1}
  #allocation0 [shape = 'u32[]', space=smem, size = 0x4, offset = 0x4, fixed_abs, tag = 'smem constant byte address 0x4 - core index']
  #allocation1 [shape = 'u32[144,128]{1,0:T(1,128)}', space=vmem, size = 0x12000, scoped, tag = 'internal scratch']
  %s0 = inlined_call_operand.vmem [shape: f32[1,16,128], index: 0, kind: input, shape index: {}]
  %s1 = inlined_call_operand.vmem [shape: f32[1,16,128], index: 1, kind: input, shape index: {}]
  %s2 = inlined_call_operand.vmem [shape: bf16[6,16], index: 2, kind: input, shape index: {}]
  %s3 = inlined_call_operand.vmem [shape: bf16[128,48], index: 3, kind: input, shape index: {}]
  %s4 = inlined_call_operand.hbm [shape: f32[1,1,1], index: 4, kind: output, shape index: {}]
  %s5 = sld [smem:[#allocation0]]
  $region26: #{tpu_custom_call.1} parent=0
    _
  %s7 = ssub.s32 1, %s5
  %s8 = scalar_select 0, %s7, %s5
  $region1: #{tpu_custom_call.1} parent=0
    #allocation2 [shape = 'u8[512]{0}', space=vmem, size = 0x400, scoped, tag = 'output window, operand 0, single buffered']
    #allocation3 [shape = 's32[1]{0}', space=sflag, size = 0x4, scoped, tag = 'scoped memory for tpu_custom_call.1']
    %9 = vsyncpa [#allocation3], 0
    // Predicated region
    $region2: #{tpu_custom_call.1} parent=1 // pred_check
      _
    $region3: #{tpu_custom_call.1} parent=1 // pred_check_branch
      %11 = sbr.rel (0) target = $region5
    $region4: #{tpu_custom_call.1} parent=1 // pred_region
      _
    $region5: #{tpu_custom_call.1} parent=1 // pred_fallthru
      _
    // Predicated region
    $region6: #{tpu_custom_call.1} parent=1 // pred_check
      _
    $region7: #{tpu_custom_call.1} parent=1 // pred_check_branch
      %13 = sbr.rel (0) target = $region9
    $region8: #{tpu_custom_call.1} parent=1 // pred_region
      _
    $region9: #{tpu_custom_call.1} parent=1 // pred_fallthru
      _
    // Predicated region
    $region10: #{tpu_custom_call.1} parent=1 // pred_check
      _
    $region11: #{tpu_custom_call.1} parent=1 // pred_check_branch
      %15 = sbr.rel (0) target = $region13
    $region12: #{tpu_custom_call.1} parent=1 // pred_region
      _
    $region13: #{tpu_custom_call.1} parent=1 // pred_fallthru
      _
    // Predicated region
    $region14: #{tpu_custom_call.1} parent=1 // pred_check
      _
    $region15: #{tpu_custom_call.1} parent=1 // pred_check_branch
      %17 = sbr.rel (0) target = $region17
    $region16: #{tpu_custom_call.1} parent=1 // pred_region
      _
    $region17: #{tpu_custom_call.1} parent=1 // pred_fallthru
      _
    %v19 = vld [vmem:[%s0] sm:$0xff]
    %v20 = vld [vmem:[%s0 + $0x8] sm:$0xff]
    %v21 = vsub.f32 %v19, 127.5
    %v22 = vsub.f32 %v20, 127.5
    %v23 = vld [vmem:[%s1] sm:$0xff]
    %v24 = vld [vmem:[%s1 + $0x8] sm:$0xff]
    %v25 = vsub.f32 %v23, 127.5
    %v26 = vsub.f32 %v24, 127.5
    %v27 = vld [vmem:[%s3] sm:$0xf]
    %v28 = vld [vmem:[%s3 + $0x4] sm:$0xf]
    %v29 = vld [vmem:[%s3 + $0x8] sm:$0xf]
    %v30 = vld [vmem:[%s3 + $0xc] sm:$0xf]
    %v31 = vld [vmem:[%s3 + $0x10] sm:$0xf]
    %v32 = vld [vmem:[%s3 + $0x14] sm:$0xf]
    %v33 = vld [vmem:[%s3 + $0x18] sm:$0xf]
    %v34 = vld [vmem:[%s3 + $0x1c] sm:$0xf]
    %v35 = vld [vmem:[%s3 + $0x20] sm:$0xf]
    %v36 = vld [vmem:[%s3 + $0x24] sm:$0xf]
    %v37 = vld [vmem:[%s3 + $0x28] sm:$0xf]
    %v38 = vld [vmem:[%s3 + $0x2c] sm:$0xf]
    %v39 = vld [vmem:[%s3 + $0x30] sm:$0xf]
    %v40 = vld [vmem:[%s3 + $0x34] sm:$0xf]
    %v41 = vld [vmem:[%s3 + $0x38] sm:$0xf]
    %v42 = vld [vmem:[%s3 + $0x3c] sm:$0xf]
    %v43 = vld [vmem:[%s2] sm:$0x7]
    %v44 = vpack.c.bf16 %v22, %v21
    %v61 = vunpack.c.l.b16 %v27
    %v62 = vunpack.c.l.b16 %v28
    %v63 = vunpack.c.l.b16 %v29
    %v64 = vunpack.c.l.b16 %v30
    %v65 = vunpack.c.l.b16 %v31
    %v66 = vunpack.c.l.b16 %v32
    %v67 = vunpack.c.l.b16 %v33
    %v68 = vunpack.c.l.b16 %v34
    %v69 = vunpack.c.l.b16 %v35
    %v70 = vunpack.c.l.b16 %v36
    %v71 = vunpack.c.l.b16 %v37
    %v72 = vunpack.c.l.b16 %v38
    %v73 = vunpack.c.l.b16 %v39
    %v74 = vunpack.c.l.b16 %v40
    %v75 = vunpack.c.l.b16 %v41
    %v76 = vunpack.c.l.b16 %v42
    %v77 = vpack.c.b16 %v62, %v61
    %v78 = vpack.c.b16 %v64, %v63
    %v79 = vpack.c.b16 %v66, %v65
    %v80 = vpack.c.b16 %v68, %v67
    %v81 = vpack.c.b16 %v70, %v69
    %v82 = vpack.c.b16 %v72, %v71
    %v83 = vpack.c.b16 %v74, %v73
    %v84 = vpack.c.b16 %v76, %v75
    %93 = vmatprep.subr.bf16.mxu0 0
    %94 = vmatpush1.bf16.msra.mxu0 %v77
    %95 = vmatprep.subr.bf16.mxu0 0
    %96 = vmatpush1.bf16.msra.mxu0 %v78
    %97 = vmatprep.subr.bf16.mxu0 0
    %98 = vmatpush1.bf16.msra.mxu0 %v79
    %99 = vmatprep.subr.bf16.mxu0 0
    %100 = vmatpush1.bf16.msra.mxu0 %v80
    %101 = vmatprep.subr.bf16.mxu0 0
    %102 = vmatpush1.bf16.msra.mxu0 %v81
    %103 = vmatprep.subr.bf16.mxu0 0
    %104 = vmatpush1.bf16.msra.mxu0 %v82
    %105 = vmatprep.subr.bf16.mxu0 0
    %106 = vmatpush1.bf16.msra.mxu0 %v83
    %107 = vmatprep.subr.bf16.mxu0 0
    %108 = vmatpush1.bf16.msra.mxu0 %v84
    %109 = vmatprep.subr.bf16.mxu0 0
    %110 = vmatpush1.bf16.msra.mxu0 0
    %111 = vmatprep.subr.bf16.mxu0 0
    %112 = vmatpush1.bf16.msra.mxu0 0
    %113 = vmatprep.subr.bf16.mxu0 0
    %114 = vmatpush1.bf16.msra.mxu0 0
    %115 = vmatprep.subr.bf16.mxu0 0
    %116 = vmatpush1.bf16.msra.mxu0 0
    %117 = vmatprep.subr.bf16.mxu0 0
    %118 = vmatpush1.bf16.msra.mxu0 0
    %119 = vmatprep.subr.bf16.mxu0 0
    %120 = vmatpush1.bf16.msra.mxu0 0
    %121 = vmatprep.subr.bf16.mxu0 0
    %122 = vmatpush1.bf16.msra.mxu0 0
    %123 = vmatprep.subr.bf16.mxu0 0
    %124 = vmatpush1.bf16.msra.mxu0 0
    %125 = vmatprep.mubr.bf16.mxu0 0
    %126 = vmatmul.mubr.bf16.gmra.mrb[0].mxu0 %v44
    %v127 = vpop.f32.mrb[0].mxu0
    %v128 = vadd.f32 0.0, %v127
    %v129 = vpop.f32.mrb[0].mxu0
    %v130 = vpop.f32.mrb[0].mxu0
    %v131 = vadd.f32 0.0, %v130
    %v132 = vpop.f32.mrb[0].mxu0
    %133 = vdwg.mxu0
    %v134 = vpack.c.bf16 %v131, %v128
    %vm135 = vcmask 130048
    %v137 = vsel %vm135, %v43, 0
    %139 = vmatprep.subr.bf16.mxu0 0
    %140 = vmatpush1.bf16.msra.mxu0 %v134
    %141 = vmatprep.subr.bf16.mxu0 0
    %142 = vmatpush1.bf16.msra.mxu0 0
    %143 = vmatprep.subr.bf16.mxu0 0
    %144 = vmatpush1.bf16.msra.mxu0 0
    %145 = vmatprep.subr.bf16.mxu0 0
    %146 = vmatpush1.bf16.msra.mxu0 0
    %147 = vmatprep.subr.bf16.mxu0 0
    %148 = vmatpush1.bf16.msra.mxu0 0
    %149 = vmatprep.subr.bf16.mxu0 0
    %150 = vmatpush1.bf16.msra.mxu0 0
    %151 = vmatprep.subr.bf16.mxu0 0
    %152 = vmatpush1.bf16.msra.mxu0 0
    %153 = vmatprep.subr.bf16.mxu0 0
    %154 = vmatpush1.bf16.msra.mxu0 0
    %155 = vmatprep.subr.bf16.mxu0 0
    %156 = vmatpush1.bf16.msra.mxu0 0
    %157 = vmatprep.subr.bf16.mxu0 0
    %158 = vmatpush1.bf16.msra.mxu0 0
    %159 = vmatprep.subr.bf16.mxu0 0
    %160 = vmatpush1.bf16.msra.mxu0 0
    %161 = vmatprep.subr.bf16.mxu0 0
    %162 = vmatpush1.bf16.msra.mxu0 0
    %163 = vmatprep.subr.bf16.mxu0 0
    %164 = vmatpush1.bf16.msra.mxu0 0
    %165 = vmatprep.subr.bf16.mxu0 0
    %166 = vmatpush1.bf16.msra.mxu0 0
    %167 = vmatprep.subr.bf16.mxu0 0
    %168 = vmatpush1.bf16.msra.mxu0 0
    %169 = vmatprep.subr.bf16.mxu0 0
    %170 = vmatpush1.bf16.msra.mxu0 0
    %171 = vmatprep.mubr.bf16.mxu0 0
    %172 = vmatmul.mubr.bf16.gmra.mrb[0].mxu0 %v137
    %v173 = vpop.f32.mrb[0].mxu0
    %v174 = vadd.f32 0.0, %v173
    %v175 = vpop.f32.mrb[0].mxu0
    %v176 = vpop.f32.mrb[0].mxu0
    %v177 = vpop.f32.mrb[0].mxu0
    %178 = vdwg.mxu0
    %v179 = vpack.c.bf16 %v26, %v25
    %180 = vmatprep.subr.bf16.mxu0 0
    %181 = vmatpush1.bf16.msra.mxu0 %v77
    %182 = vmatprep.subr.bf16.mxu0 0
    %183 = vmatpush1.bf16.msra.mxu0 %v78
    %184 = vmatprep.subr.bf16.mxu0 0
    %185 = vmatpush1.bf16.msra.mxu0 %v79
    %186 = vmatprep.subr.bf16.mxu0 0
    %187 = vmatpush1.bf16.msra.mxu0 %v80
    %188 = vmatprep.subr.bf16.mxu0 0
    %189 = vmatpush1.bf16.msra.mxu0 %v81
    %190 = vmatprep.subr.bf16.mxu0 0
    %191 = vmatpush1.bf16.msra.mxu0 %v82
    %192 = vmatprep.subr.bf16.mxu0 0
    %193 = vmatpush1.bf16.msra.mxu0 %v83
    %194 = vmatprep.subr.bf16.mxu0 0
    %195 = vmatpush1.bf16.msra.mxu0 %v84
    %196 = vmatprep.subr.bf16.mxu0 0
    %197 = vmatpush1.bf16.msra.mxu0 0
    %198 = vmatprep.subr.bf16.mxu0 0
    %199 = vmatpush1.bf16.msra.mxu0 0
    %200 = vmatprep.subr.bf16.mxu0 0
    %201 = vmatpush1.bf16.msra.mxu0 0
    %202 = vmatprep.subr.bf16.mxu0 0
    %203 = vmatpush1.bf16.msra.mxu0 0
    %204 = vmatprep.subr.bf16.mxu0 0
    %205 = vmatpush1.bf16.msra.mxu0 0
    %206 = vmatprep.subr.bf16.mxu0 0
    %207 = vmatpush1.bf16.msra.mxu0 0
    %208 = vmatprep.subr.bf16.mxu0 0
    %209 = vmatpush1.bf16.msra.mxu0 0
    %210 = vmatprep.subr.bf16.mxu0 0
    %211 = vmatpush1.bf16.msra.mxu0 0
    %212 = vmatprep.mubr.bf16.mxu0 0
    %213 = vmatmul.mubr.bf16.gmra.mrb[0].mxu0 %v179
    %v214 = vpop.f32.mrb[0].mxu0
    %v215 = vadd.f32 0.0, %v214
    %v216 = vpop.f32.mrb[0].mxu0
    %v217 = vpop.f32.mrb[0].mxu0
    %v218 = vadd.f32 0.0, %v217
    %v219 = vpop.f32.mrb[0].mxu0
    %220 = vdwg.mxu0
    %v221 = vpack.c.bf16 %v218, %v215
    %222 = vmatprep.subr.bf16.mxu0 0
    %223 = vmatpush1.bf16.msra.mxu0 %v221
    %224 = vmatprep.subr.bf16.mxu0 0
    %225 = vmatpush1.bf16.msra.mxu0 0
    %226 = vmatprep.subr.bf16.mxu0 0
    %227 = vmatpush1.bf16.msra.mxu0 0
    %228 = vmatprep.subr.bf16.mxu0 0
    %229 = vmatpush1.bf16.msra.mxu0 0
    %230 = vmatprep.subr.bf16.mxu0 0
    %231 = vmatpush1.bf16.msra.mxu0 0
    %232 = vmatprep.subr.bf16.mxu0 0
    %233 = vmatpush1.bf16.msra.mxu0 0
    %234 = vmatprep.subr.bf16.mxu0 0
    %235 = vmatpush1.bf16.msra.mxu0 0
    %236 = vmatprep.subr.bf16.mxu0 0
    %237 = vmatpush1.bf16.msra.mxu0 0
    %238 = vmatprep.subr.bf16.mxu0 0
    %239 = vmatpush1.bf16.msra.mxu0 0
    %240 = vmatprep.subr.bf16.mxu0 0
    %241 = vmatpush1.bf16.msra.mxu0 0
    %242 = vmatprep.subr.bf16.mxu0 0
    %243 = vmatpush1.bf16.msra.mxu0 0
    %244 = vmatprep.subr.bf16.mxu0 0
    %245 = vmatpush1.bf16.msra.mxu0 0
    %246 = vmatprep.subr.bf16.mxu0 0
    %247 = vmatpush1.bf16.msra.mxu0 0
    %248 = vmatprep.subr.bf16.mxu0 0
    %249 = vmatpush1.bf16.msra.mxu0 0
    %250 = vmatprep.subr.bf16.mxu0 0
    %251 = vmatpush1.bf16.msra.mxu0 0
    %252 = vmatprep.subr.bf16.mxu0 0
    %253 = vmatpush1.bf16.msra.mxu0 0
    %254 = vmatprep.mubr.bf16.mxu0 0
    %255 = vmatmul.mubr.bf16.gmra.mrb[0].mxu0 %v137
    %v256 = vpop.f32.mrb[0].mxu0
    %v257 = vadd.f32 0.0, %v256
    %v258 = vpop.f32.mrb[0].mxu0
    %v259 = vpop.f32.mrb[0].mxu0
    %v260 = vpop.f32.mrb[0].mxu0
    %261 = vdwg.mxu0
    %v262 = vmul.f32 %v21, %v21
    %v263 = vmul.f32 %v22, %v22
    %v264 = vpack.c.bf16 %v263, %v262
    %265 = vmatprep.subr.bf16.mxu0 0
    %266 = vmatpush1.bf16.msra.mxu0 %v77
    %267 = vmatprep.subr.bf16.mxu0 0
    %268 = vmatpush1.bf16.msra.mxu0 %v78
    %269 = vmatprep.subr.bf16.mxu0 0
    %270 = vmatpush1.bf16.msra.mxu0 %v79
    %271 = vmatprep.subr.bf16.mxu0 0
    %272 = vmatpush1.bf16.msra.mxu0 %v80
    %273 = vmatprep.subr.bf16.mxu0 0
    %274 = vmatpush1.bf16.msra.mxu0 %v81
    %275 = vmatprep.subr.bf16.mxu0 0
    %276 = vmatpush1.bf16.msra.mxu0 %v82
    %277 = vmatprep.subr.bf16.mxu0 0
    %278 = vmatpush1.bf16.msra.mxu0 %v83
    %279 = vmatprep.subr.bf16.mxu0 0
    %280 = vmatpush1.bf16.msra.mxu0 %v84
    %281 = vmatprep.subr.bf16.mxu0 0
    %282 = vmatpush1.bf16.msra.mxu0 0
    %283 = vmatprep.subr.bf16.mxu0 0
    %284 = vmatpush1.bf16.msra.mxu0 0
    %285 = vmatprep.subr.bf16.mxu0 0
    %286 = vmatpush1.bf16.msra.mxu0 0
    %287 = vmatprep.subr.bf16.mxu0 0
    %288 = vmatpush1.bf16.msra.mxu0 0
    %289 = vmatprep.subr.bf16.mxu0 0
    %290 = vmatpush1.bf16.msra.mxu0 0
    %291 = vmatprep.subr.bf16.mxu0 0
    %292 = vmatpush1.bf16.msra.mxu0 0
    %293 = vmatprep.subr.bf16.mxu0 0
    %294 = vmatpush1.bf16.msra.mxu0 0
    %295 = vmatprep.subr.bf16.mxu0 0
    %296 = vmatpush1.bf16.msra.mxu0 0
    %297 = vmatprep.mubr.bf16.mxu0 0
    %298 = vmatmul.mubr.bf16.gmra.mrb[0].mxu0 %v264
    %v299 = vpop.f32.mrb[0].mxu0
    %v300 = vadd.f32 0.0, %v299
    %v301 = vpop.f32.mrb[0].mxu0
    %v302 = vpop.f32.mrb[0].mxu0
    %v303 = vadd.f32 0.0, %v302
    %v304 = vpop.f32.mrb[0].mxu0
    %305 = vdwg.mxu0
    %v306 = vpack.c.bf16 %v303, %v300
    %307 = vmatprep.subr.bf16.mxu0 0
    %308 = vmatpush1.bf16.msra.mxu0 %v306
    %309 = vmatprep.subr.bf16.mxu0 0
    %310 = vmatpush1.bf16.msra.mxu0 0
    %311 = vmatprep.subr.bf16.mxu0 0
    %312 = vmatpush1.bf16.msra.mxu0 0
    %313 = vmatprep.subr.bf16.mxu0 0
    %314 = vmatpush1.bf16.msra.mxu0 0
    %315 = vmatprep.subr.bf16.mxu0 0
    %316 = vmatpush1.bf16.msra.mxu0 0
    %317 = vmatprep.subr.bf16.mxu0 0
    %318 = vmatpush1.bf16.msra.mxu0 0
    %319 = vmatprep.subr.bf16.mxu0 0
    %320 = vmatpush1.bf16.msra.mxu0 0
    %321 = vmatprep.subr.bf16.mxu0 0
    %322 = vmatpush1.bf16.msra.mxu0 0
    %323 = vmatprep.subr.bf16.mxu0 0
    %324 = vmatpush1.bf16.msra.mxu0 0
    %325 = vmatprep.subr.bf16.mxu0 0
    %326 = vmatpush1.bf16.msra.mxu0 0
    %327 = vmatprep.subr.bf16.mxu0 0
    %328 = vmatpush1.bf16.msra.mxu0 0
    %329 = vmatprep.subr.bf16.mxu0 0
    %330 = vmatpush1.bf16.msra.mxu0 0
    %331 = vmatprep.subr.bf16.mxu0 0
    %332 = vmatpush1.bf16.msra.mxu0 0
    %333 = vmatprep.subr.bf16.mxu0 0
    %334 = vmatpush1.bf16.msra.mxu0 0
    %335 = vmatprep.subr.bf16.mxu0 0
    %336 = vmatpush1.bf16.msra.mxu0 0
    %337 = vmatprep.subr.bf16.mxu0 0
    %338 = vmatpush1.bf16.msra.mxu0 0
    %339 = vmatprep.mubr.bf16.mxu0 0
    %340 = vmatmul.mubr.bf16.gmra.mrb[0].mxu0 %v137
    %v341 = vpop.f32.mrb[0].mxu0
    %v342 = vadd.f32 0.0, %v341
    %v343 = vpop.f32.mrb[0].mxu0
    %v344 = vpop.f32.mrb[0].mxu0
    %v345 = vpop.f32.mrb[0].mxu0
    %346 = vdwg.mxu0
    %v347 = vmul.f32 %v25, %v25
    %v348 = vmul.f32 %v26, %v26
    %v349 = vpack.c.bf16 %v348, %v347
    %350 = vmatprep.subr.bf16.mxu0 0
    %351 = vmatpush1.bf16.msra.mxu0 %v77
    %352 = vmatprep.subr.bf16.mxu0 0
    %353 = vmatpush1.bf16.msra.mxu0 %v78
    %354 = vmatprep.subr.bf16.mxu0 0
    %355 = vmatpush1.bf16.msra.mxu0 %v79
    %356 = vmatprep.subr.bf16.mxu0 0
    %357 = vmatpush1.bf16.msra.mxu0 %v80
    %358 = vmatprep.subr.bf16.mxu0 0
    %359 = vmatpush1.bf16.msra.mxu0 %v81
    %360 = vmatprep.subr.bf16.mxu0 0
    %361 = vmatpush1.bf16.msra.mxu0 %v82
    %362 = vmatprep.subr.bf16.mxu0 0
    %363 = vmatpush1.bf16.msra.mxu0 %v83
    %364 = vmatprep.subr.bf16.mxu0 0
    %365 = vmatpush1.bf16.msra.mxu0 %v84
    %366 = vmatprep.subr.bf16.mxu0 0
    %367 = vmatpush1.bf16.msra.mxu0 0
    %368 = vmatprep.subr.bf16.mxu0 0
    %369 = vmatpush1.bf16.msra.mxu0 0
    %370 = vmatprep.subr.bf16.mxu0 0
    %371 = vmatpush1.bf16.msra.mxu0 0
    %372 = vmatprep.subr.bf16.mxu0 0
    %373 = vmatpush1.bf16.msra.mxu0 0
    %374 = vmatprep.subr.bf16.mxu0 0
    %375 = vmatpush1.bf16.msra.mxu0 0
    %376 = vmatprep.subr.bf16.mxu0 0
    %377 = vmatpush1.bf16.msra.mxu0 0
    %378 = vmatprep.subr.bf16.mxu0 0
    %379 = vmatpush1.bf16.msra.mxu0 0
    %380 = vmatprep.subr.bf16.mxu0 0
    %381 = vmatpush1.bf16.msra.mxu0 0
    %382 = vmatprep.mubr.bf16.mxu0 0
    %383 = vmatmul.mubr.bf16.gmra.mrb[0].mxu0 %v349
    %v384 = vpop.f32.mrb[0].mxu0
    %v385 = vadd.f32 0.0, %v384
    %v386 = vpop.f32.mrb[0].mxu0
    %v387 = vpop.f32.mrb[0].mxu0
    %v388 = vadd.f32 0.0, %v387
    %v389 = vpop.f32.mrb[0].mxu0
    %390 = vdwg.mxu0
    %v391 = vpack.c.bf16 %v388, %v385
    %392 = vmatprep.subr.bf16.mxu0 0
    %393 = vmatpush1.bf16.msra.mxu0 %v391
    %394 = vmatprep.subr.bf16.mxu0 0
    %395 = vmatpush1.bf16.msra.mxu0 0
    %396 = vmatprep.subr.bf16.mxu0 0
    %397 = vmatpush1.bf16.msra.mxu0 0
    %398 = vmatprep.subr.bf16.mxu0 0
    %399 = vmatpush1.bf16.msra.mxu0 0
    %400 = vmatprep.subr.bf16.mxu0 0
    %401 = vmatpush1.bf16.msra.mxu0 0
    %402 = vmatprep.subr.bf16.mxu0 0
    %403 = vmatpush1.bf16.msra.mxu0 0
    %404 = vmatprep.subr.bf16.mxu0 0
    %405 = vmatpush1.bf16.msra.mxu0 0
    %406 = vmatprep.subr.bf16.mxu0 0
    %407 = vmatpush1.bf16.msra.mxu0 0
    %408 = vmatprep.subr.bf16.mxu0 0
    %409 = vmatpush1.bf16.msra.mxu0 0
    %410 = vmatprep.subr.bf16.mxu0 0
    %411 = vmatpush1.bf16.msra.mxu0 0
    %412 = vmatprep.subr.bf16.mxu0 0
    %413 = vmatpush1.bf16.msra.mxu0 0
    %414 = vmatprep.subr.bf16.mxu0 0
    %415 = vmatpush1.bf16.msra.mxu0 0
    %416 = vmatprep.subr.bf16.mxu0 0
    %417 = vmatpush1.bf16.msra.mxu0 0
    %418 = vmatprep.subr.bf16.mxu0 0
    %419 = vmatpush1.bf16.msra.mxu0 0
    %420 = vmatprep.subr.bf16.mxu0 0
    %421 = vmatpush1.bf16.msra.mxu0 0
    %422 = vmatprep.subr.bf16.mxu0 0
    %423 = vmatpush1.bf16.msra.mxu0 0
    %424 = vmatprep.mubr.bf16.mxu0 0
    %425 = vmatmul.mubr.bf16.gmra.mrb[0].mxu0 %v137
    %v426 = vpop.f32.mrb[0].mxu0
    %v427 = vadd.f32 0.0, %v426
    %v428 = vpop.f32.mrb[0].mxu0
    %v429 = vpop.f32.mrb[0].mxu0
    %v430 = vpop.f32.mrb[0].mxu0
    %431 = vdwg.mxu0
    %v432 = vmul.f32 %v21, %v25
    %v433 = vmul.f32 %v22, %v26
    %v434 = vpack.c.bf16 %v433, %v432
    %435 = vmatprep.subr.bf16.mxu0 0
    %436 = vmatpush1.bf16.msra.mxu0 %v77
    %437 = vmatprep.subr.bf16.mxu0 0
    %438 = vmatpush1.bf16.msra.mxu0 %v78
    %439 = vmatprep.subr.bf16.mxu0 0
    %440 = vmatpush1.bf16.msra.mxu0 %v79
    %441 = vmatprep.subr.bf16.mxu0 0
    %442 = vmatpush1.bf16.msra.mxu0 %v80
    %443 = vmatprep.subr.bf16.mxu0 0
    %444 = vmatpush1.bf16.msra.mxu0 %v81
    %445 = vmatprep.subr.bf16.mxu0 0
    %446 = vmatpush1.bf16.msra.mxu0 %v82
    %447 = vmatprep.subr.bf16.mxu0 0
    %448 = vmatpush1.bf16.msra.mxu0 %v83
    %449 = vmatprep.subr.bf16.mxu0 0
    %450 = vmatpush1.bf16.msra.mxu0 %v84
    %451 = vmatprep.subr.bf16.mxu0 0
    %452 = vmatpush1.bf16.msra.mxu0 0
    %453 = vmatprep.subr.bf16.mxu0 0
    %454 = vmatpush1.bf16.msra.mxu0 0
    %455 = vmatprep.subr.bf16.mxu0 0
    %456 = vmatpush1.bf16.msra.mxu0 0
    %457 = vmatprep.subr.bf16.mxu0 0
    %458 = vmatpush1.bf16.msra.mxu0 0
    %459 = vmatprep.subr.bf16.mxu0 0
    %460 = vmatpush1.bf16.msra.mxu0 0
    %461 = vmatprep.subr.bf16.mxu0 0
    %462 = vmatpush1.bf16.msra.mxu0 0
    %463 = vmatprep.subr.bf16.mxu0 0
    %464 = vmatpush1.bf16.msra.mxu0 0
    %465 = vmatprep.subr.bf16.mxu0 0
    %466 = vmatpush1.bf16.msra.mxu0 0
    %467 = vmatprep.mubr.bf16.mxu0 0
    %468 = vmatmul.mubr.bf16.gmra.mrb[0].mxu0 %v434
    %v469 = vpop.f32.mrb[0].mxu0
    %v470 = vadd.f32 0.0, %v469
    %v471 = vpop.f32.mrb[0].mxu0
    %v472 = vpop.f32.mrb[0].mxu0
    %v473 = vadd.f32 0.0, %v472
    %v474 = vpop.f32.mrb[0].mxu0
    %475 = vdwg.mxu0
    %v476 = vpack.c.bf16 %v473, %v470
    %477 = vmatprep.subr.bf16.mxu0 0
    %478 = vmatpush1.bf16.msra.mxu0 %v476
    %479 = vmatprep.subr.bf16.mxu0 0
    %480 = vmatpush1.bf16.msra.mxu0 0
    %481 = vmatprep.subr.bf16.mxu0 0
    %482 = vmatpush1.bf16.msra.mxu0 0
    %483 = vmatprep.subr.bf16.mxu0 0
    %484 = vmatpush1.bf16.msra.mxu0 0
    %485 = vmatprep.subr.bf16.mxu0 0
    %486 = vmatpush1.bf16.msra.mxu0 0
    %487 = vmatprep.subr.bf16.mxu0 0
    %488 = vmatpush1.bf16.msra.mxu0 0
    %489 = vmatprep.subr.bf16.mxu0 0
    %490 = vmatpush1.bf16.msra.mxu0 0
    %491 = vmatprep.subr.bf16.mxu0 0
    %492 = vmatpush1.bf16.msra.mxu0 0
    %493 = vmatprep.subr.bf16.mxu0 0
    %494 = vmatpush1.bf16.msra.mxu0 0
    %495 = vmatprep.subr.bf16.mxu0 0
    %496 = vmatpush1.bf16.msra.mxu0 0
    %497 = vmatprep.subr.bf16.mxu0 0
    %498 = vmatpush1.bf16.msra.mxu0 0
    %499 = vmatprep.subr.bf16.mxu0 0
    %500 = vmatpush1.bf16.msra.mxu0 0
    %501 = vmatprep.subr.bf16.mxu0 0
    %502 = vmatpush1.bf16.msra.mxu0 0
    %503 = vmatprep.subr.bf16.mxu0 0
    %504 = vmatpush1.bf16.msra.mxu0 0
    %505 = vmatprep.subr.bf16.mxu0 0
    %506 = vmatpush1.bf16.msra.mxu0 0
    %507 = vmatprep.subr.bf16.mxu0 0
    %508 = vmatpush1.bf16.msra.mxu0 0
    %509 = vmatprep.mubr.bf16.mxu0 0
    %510 = vmatmul.mubr.bf16.gmra.mrb[0].mxu0 %v137
    %v511 = vpop.f32.mrb[0].mxu0
    %v512 = vadd.f32 0.0, %v511
    %v513 = vpop.f32.mrb[0].mxu0
    %v514 = vpop.f32.mrb[0].mxu0
    %v515 = vpop.f32.mrb[0].mxu0
    %516 = vdwg.mxu0
    %v517 = vadd.f32 %v174, 127.5
    %v518 = vadd.f32 %v257, 127.5
    %v519 = vmul.f32 %v174, %v174
    %v520 = vsub.f32 %v342, %v519
    %v521 = vmul.f32 %v257, %v257
    %v522 = vsub.f32 %v427, %v521
    %v523 = vmul.f32 %v174, %v257
    %v524 = vsub.f32 %v512, %v523
    %v525 = vmul.f32 %v517, 2.0
    %v526 = vmul.f32 %v525, %v518
    %v527 = vadd.f32 %v526, 6.5025
    %v528 = vmul.f32 %v524, 2.0
    %v529 = vadd.f32 %v528, 58.5225
    %v530 = vmul.f32 %v527, %v529
    %v531 = vmul.f32 %v517, %v517
    %v532 = vmul.f32 %v518, %v518
    %v533 = vadd.f32 %v531, %v532
    %v534 = vadd.f32 %v533, 6.5025
    %v535 = vadd.f32 %v520, %v522
    %v536 = vadd.f32 %v535, 58.5225
    %v537 = vmul.f32 %v534, %v536
    %v538 = vrcp.pop %v537
    %v539 = vmul.f32 %v537, %v538
    %v540 = vsub.f32 2.0, %v539
    %v541 = vmul.f32 %v538, %v540
    %v542 = vmul.f32 %v530, %v541
    %vm543 = vcmask 390144
    %v544 = vsel %vm543, %v542, 0.0
    %545 = vadd.xlane.f32.xlu0 %v544
    %v546 = vpop.xlane.xlu0 %545
    %vm547 = vcmask 1045504
    %v548 = vsel %vm547, %v546, 0.0
    %v549 = vrot.slane %v548, 4
    %v550 = vadd.f32 %v548, %v549
    %v551 = vrot.slane %v550, 2
    %v552 = vadd.f32 %v550, %v551
    %v553 = vrot.slane %v552, 1
    %v554 = vadd.f32 %v552, %v553
    %v555 = vmul.f32 %v554, 0.0034722222
    %vm556 = vcmask 0
    %557 = vst.msk [vmem:[#allocation2] sm:$0x1] %vm556, %v555
    // Predicated region
    $region18: #{tpu_custom_call.1} parent=1 // pred_check
      _
    $region19: #{tpu_custom_call.1} parent=1 // pred_check_branch
      %559 = sbr.rel (0) target = $region21
    $region20: #{tpu_custom_call.1} parent=1 // pred_region
      %s561 = ssub.s32 16, 16
      %562 = vsyncadd [#allocation3], %s561
      %s564 = sshll.u32 [#allocation2], 4
      %s565 = int_to_ptr.vmem [resolvable:$true] %s564
      %567 = dma.vmem_to_hbm [thread:$0]  %s565, 16, %s4, [#allocation3]
    $region21: #{tpu_custom_call.1} parent=1 // pred_fallthru
      _
    // Predicated region
    $region22: #{tpu_custom_call.1} parent=1 // pred_check
      _
    $region23: #{tpu_custom_call.1} parent=1 // pred_check_branch
      %569 = sbr.rel (0) target = $region25
    $region24: #{tpu_custom_call.1} parent=1 // pred_region
      %570 = dma.done [#allocation3], 16
    $region25: #{tpu_custom_call.1} parent=1 // pred_fallthru
      _
    %571 = vsyncpa [#allocation3], 1

</llo_original>
